<compile_context>
chip_gen: v6e
topology: v6e:2x2x1
jax: 0.10.0
libtpu: 0.0.40
codegen_flags: <defaults>
</compile_context>

<pallas_src>
import functools

import jax
import jax.numpy as jnp
from jax.experimental import pallas as pl
from jax.experimental.pallas import tpu as pltpu

NEG_SLOPE = 0.01  # PyTorch LeakyReLU default negative_slope


def _round_up(n, m):
    return ((n + m - 1) // m) * m


def _crl_kernel(x_ref, c_ref, w1_ref, b1_ref, w2_ref, b2_ref, out_ref, *,
                temperature, n_concepts, n_classes):
    """One grid step processes TB batch samples.

    x_ref : (TB*C, E)   matmul dtype (bf16 or f32), rows = samples x concepts
    c_ref : (TB, C)     f32 concept truth values
    w1_ref: (E, 2E)     [w1_sign | w1_filter]      (matmul dtype)
    b1_ref: (1, 2E)     [b1_sign | b1_filter]      (f32)
    w2_ref: (2E, 2K)    blockdiag(w2_sign, w2_filter) (matmul dtype)
    b2_ref: (1, 2K)     [b2_sign | b2_filter]      (f32)
    out_ref: (TB, K)    f32 predictions
    """
    C = n_concepts
    K = n_classes
    tb = out_ref.shape[0]

    x = x_ref[...]                                                   # (TB*C, E)

    # ---- fused layer 1: Linear(E, E) for both branches at once -> LeakyReLU ----
    h = jnp.dot(x, w1_ref[...], preferred_element_type=jnp.float32) + b1_ref[...]
    h = jnp.where(h > 0, h, NEG_SLOPE * h)                           # (TB*C, 2E) f32

    # ---- fused layer 2: block-diagonal Linear(2E, 2K) -> [sign_logits | filt_logits] ----
    logits = jnp.dot(h.astype(w2_ref.dtype), w2_ref[...],
                     preferred_element_type=jnp.float32) + b2_ref[...]   # (TB*C, 2K)
    logits = logits.reshape(tb, C, 2 * K)                            # concepts on sublanes

    sign_logits = logits[:, :, :K]                                   # (TB, C, K)
    filt_logits = logits[:, :, K:]                                   # (TB, C, K)

    sign_attn = jax.nn.sigmoid(sign_logits)

    # ---- softselect: log_softmax over the concept axis (torch dim=1 -> axis=1 here) ----
    m = jnp.max(filt_logits, axis=1, keepdims=True)
    lse = m + jnp.log(jnp.sum(jnp.exp(filt_logits - m), axis=1, keepdims=True))
    logsm = filt_logits - lse
    filter_attn = jax.nn.sigmoid(
        logsm - temperature * jnp.mean(logsm, axis=1, keepdims=True))    # (TB, C, K)

    # ---- Godel t-norm logic ----
    vals = c_ref[...].astype(jnp.float32)[:, :, None]                # (TB, C, 1)
    # iff_pair(a, b) = min(max(1-a, b), max(a, 1-b))
    sign_terms = jnp.minimum(jnp.maximum(1.0 - sign_attn, vals),
                             jnp.maximum(sign_attn, 1.0 - vals))
    # disj_pair(sign_terms, neg(filter_attn)) = max(sign_terms, 1 - filter_attn)
    filtered = jnp.maximum(sign_terms, 1.0 - filter_attn)
    # conj over concepts (torch dim=1) = min over axis=1
    out_ref[...] = jnp.min(filtered, axis=1)                         # (TB, K)


def concept_reasoning_forward(x, c, params, temperature=100.0, *,
                              block_b=128, matmul_dtype=jnp.bfloat16):
    """x: (B, C, E) f32, c: (B, C) f32 -> preds: (B, K) f32."""
    B, C, E = x.shape
    K = params["w2s"].shape[1]

    # ---- fuse sign/filter branches into single wide matmuls (wrapper-side, one-time) ----
    w1 = jnp.concatenate([params["w1s"], params["w1f"]], axis=1)          # (E, 2E)
    b1 = jnp.concatenate([params["b1s"], params["b1f"]], axis=1)          # (1, 2E)
    zeros = jnp.zeros((E, K), jnp.float32)
    w2 = jnp.concatenate(
        [jnp.concatenate([params["w2s"], zeros], axis=1),
         jnp.concatenate([zeros, params["w2f"]], axis=1)], axis=0)        # (2E, 2K) block-diag
    b2 = jnp.concatenate([params["b2s"], params["b2f"]], axis=1)          # (1, 2K)

    # ---- batch tiling: TB samples per grid step; pad B so it divides evenly ----
    tb = max(8, min(block_b, _round_up(B, 8)))
    tb = _round_up(tb, 8)                    # sublane-aligned batch tile
    b_pad = _round_up(B, tb)
    if b_pad != B:
        x = jnp.pad(x, ((0, b_pad - B), (0, 0), (0, 0)))
        c = jnp.pad(c, ((0, b_pad - B), (0, 0)))
    num_blocks = b_pad // tb

    x_flat = x.reshape(b_pad * C, E).astype(matmul_dtype)   # rows = samples x concepts
    c_f32 = c.astype(jnp.float32)

    kernel = functools.partial(_crl_kernel, temperature=float(temperature),
                               n_concepts=C, n_classes=K)

    full = lambda i: (0, 0)        # weights/biases: same (whole) block every grid step
    per_b = lambda i: (i, 0)       # per-batch-tile blocks

    out = pl.pallas_call(
        kernel,
        out_shape=jax.ShapeDtypeStruct((b_pad, K), jnp.float32),
        grid_spec=pltpu.PrefetchScalarGridSpec(
            num_scalar_prefetch=0,
            grid=(num_blocks,),
            in_specs=[
                pl.BlockSpec((tb * C, E), per_b),      # x rows
                pl.BlockSpec((tb, C), per_b),          # c
                pl.BlockSpec((E, 2 * E), full),        # fused layer-1 weight
                pl.BlockSpec((1, 2 * E), full),        # fused layer-1 bias
                pl.BlockSpec((2 * E, 2 * K), full),    # block-diag layer-2 weight
                pl.BlockSpec((1, 2 * K), full),        # fused layer-2 bias
            ],
            out_specs=pl.BlockSpec((tb, K), per_b),
        ),
        compiler_params=pltpu.CompilerParams(
            dimension_semantics=("parallel",)),
    )(x_flat, c_f32, w1.astype(matmul_dtype), b1, w2.astype(matmul_dtype), b2)

    return out[:B]


def _reference_forward(x, c, params, temperature=100.0):
    """Pure-JAX f32 reference mirroring the PyTorch module."""
    def mlp(x, w1, b1, w2, b2):
        h = x @ w1 + b1
        h = jnp.where(h > 0, h, NEG_SLOPE * h)
        return h @ w2 + b2

    sign_attn = jax.nn.sigmoid(
        mlp(x, params["w1s"], params["b1s"][0], params["w2s"], params["b2s"][0]))
    filt = mlp(x, params["w1f"], params["b1f"][0], params["w2f"], params["b2f"][0])
    logsm = jax.nn.log_softmax(filt, axis=1)
    filter_attn = jax.nn.sigmoid(
        logsm - temperature * jnp.mean(logsm, axis=1, keepdims=True))
    values = c[:, :, None]
    sign_terms = jnp.minimum(jnp.maximum(1.0 - sign_attn, values),
                             jnp.maximum(sign_attn, 1.0 - values))
    filtered = jnp.maximum(sign_terms, 1.0 - filter_attn)
    return jnp.min(filtered, axis=1)


def _init_params(key, emb_size, n_classes):
    ks = jax.random.split(key, 8)
    u = lambda k, shape, fan_in: jax.random.uniform(
        k, shape, jnp.float32, -1.0 / jnp.sqrt(fan_in), 1.0 / jnp.sqrt(fan_in))
    return {
        "w1s": u(ks[0], (emb_size, emb_size), emb_size),
        "b1s": u(ks[1], (1, emb_size), emb_size),
        "w2s": u(ks[2], (emb_size, n_classes), emb_size),
        "b2s": u(ks[3], (1, n_classes), emb_size),
        "w1f": u(ks[4], (emb_size, emb_size), emb_size),
        "b1f": u(ks[5], (1, emb_size), emb_size),
        "w2f": u(ks[6], (emb_size, n_classes), emb_size),
        "b2f": u(ks[7], (1, n_classes), emb_size),
    }


if __name__ == "__main__":
    B, C, E, K = 16, 8, 32, 4   # batch, n_concepts, emb_size, n_classes
    TB = 8                      # batch tile per grid step -> grid of 2 (both TCs on v7x)
    TEMPERATURE = 100.0

    key = jax.random.PRNGKey(0)
    kx, kc, kp = jax.random.split(key, 3)
    x = jax.random.normal(kx, (B, C, E), jnp.float32)
    c = jax.random.uniform(kc, (B, C), jnp.float32)     # concept truth degrees in [0,1]
    params = _init_params(kp, E, K)

    ref = _reference_forward(x, c, params, TEMPERATURE)

    # f32 matmul path: exactness check of the batched / fused refactor.
    preds_f32 = concept_reasoning_forward(x, c, params, TEMPERATURE,
                                          block_b=TB, matmul_dtype=jnp.float32)
    preds_f32 = jax.block_until_ready(preds_f32)
    assert preds_f32.shape == (B, K)
    assert jnp.allclose(preds_f32, ref, atol=1e-4, rtol=1e-4), (preds_f32, ref)

    # bf16 matmul path (default, perf config) -- looser tolerance for bf16 MXU inputs.
    preds_bf16 = concept_reasoning_forward(x, c, params, TEMPERATURE, block_b=TB)
    preds_bf16 = jax.block_until_ready(preds_bf16)
    assert preds_bf16.shape == (B, K)
    assert jnp.allclose(preds_bf16, ref, atol=2e-2, rtol=2e-2), (preds_bf16, ref)

    # Ragged batch (exercises the padding path; padded rows never written back).
    preds_rag = concept_reasoning_forward(x[:13], c[:13], params, TEMPERATURE, block_b=TB)
    preds_rag = jax.block_until_ready(preds_rag)
    assert preds_rag.shape == (13, K)
    assert jnp.allclose(preds_rag, ref[:13], atol=2e-2, rtol=2e-2), (preds_rag, ref[:13])

    print("KERNEL_OK")
</pallas_src>

<mosaic_0001>
module attributes {stable_mosaic.version = 11 : i64} {
  func.func @_crl_kernel(%arg0: i32, %arg1: memref<64x32xf32, #tpu.memory_space<vmem>>, %arg2: memref<8x8xf32, #tpu.memory_space<vmem>>, %arg3: memref<32x64xf32, #tpu.memory_space<vmem>>, %arg4: memref<1x64xf32, #tpu.memory_space<vmem>>, %arg5: memref<64x8xf32, #tpu.memory_space<vmem>>, %arg6: memref<1x8xf32, #tpu.memory_space<vmem>>, %arg7: memref<8x4xf32, #tpu.memory_space<vmem>>) attributes {dimension_semantics = [#tpu.dimension_semantics<parallel>], iteration_bounds = array<i64: 2>, scalar_prefetch = 0 : i64, scratch_operands = 0 : i64, tpu.core_type = #tpu.core_type<tc>, window_params = [{transform_indices = @transform_0, window_bounds = array<i64: 64, 32>}, {transform_indices = @transform_1, window_bounds = array<i64: 8, 8>}, {pipeline_mode = #tpu.pipeline_mode<synchronous>, transform_indices = @transform_2, window_bounds = array<i64: 32, 64>}, {pipeline_mode = #tpu.pipeline_mode<synchronous>, transform_indices = @transform_3, window_bounds = array<i64: 1, 64>}, {pipeline_mode = #tpu.pipeline_mode<synchronous>, transform_indices = @transform_4, window_bounds = array<i64: 64, 8>}, {pipeline_mode = #tpu.pipeline_mode<synchronous>, transform_indices = @transform_5, window_bounds = array<i64: 1, 8>}, {transform_indices = @transform_6, window_bounds = array<i64: 8, 4>}]} {
    %c0 = arith.constant 0 : index
    %c0_0 = arith.constant 0 : index
    %0 = vector.load %arg1[%c0, %c0_0] : memref<64x32xf32, #tpu.memory_space<vmem>>, vector<64x32xf32>
    %c0_1 = arith.constant 0 : index
    %c0_2 = arith.constant 0 : index
    %1 = vector.load %arg3[%c0_1, %c0_2] : memref<32x64xf32, #tpu.memory_space<vmem>>, vector<32x64xf32>
    %cst = arith.constant dense<0.000000e+00> : vector<64x64xf32>
    %2 = tpu.matmul %0, %1, %cst {dimension_numbers = #tpu.dot_dimension_numbers<[1], [0], [0], [1], [0, 0, 1, 1], [], []>} : vector<64x32xf32>, vector<32x64xf32>, vector<64x64xf32> -> vector<64x64xf32>
    %c0_3 = arith.constant 0 : index
    %c0_4 = arith.constant 0 : index
    %3 = vector.load %arg4[%c0_3, %c0_4] : memref<1x64xf32, #tpu.memory_space<vmem>>, vector<1x64xf32>
    %4 = vector.broadcast %3 : vector<1x64xf32> to vector<64x64xf32>
    %5 = arith.addf %2, %4 : vector<64x64xf32>
    %cst_5 = arith.constant 0.000000e+00 : f32
    %6 = vector.broadcast %cst_5 : f32 to vector<64x64xf32>
    %7 = arith.cmpf ogt, %5, %6 : vector<64x64xf32>
    %cst_6 = arith.constant 0.00999999977 : f32
    %8 = vector.broadcast %cst_6 : f32 to vector<64x64xf32>
    %9 = arith.mulf %8, %5 : vector<64x64xf32>
    %10 = arith.select %7, %5, %9 : vector<64x64xi1>, vector<64x64xf32>
    %c0_7 = arith.constant 0 : index
    %c0_8 = arith.constant 0 : index
    %11 = vector.load %arg5[%c0_7, %c0_8] : memref<64x8xf32, #tpu.memory_space<vmem>>, vector<64x8xf32>
    %cst_9 = arith.constant dense<0.000000e+00> : vector<64x8xf32>
    %12 = tpu.matmul %10, %11, %cst_9 {dimension_numbers = #tpu.dot_dimension_numbers<[1], [0], [0], [1], [0, 0, 1, 1], [], []>} : vector<64x64xf32>, vector<64x8xf32>, vector<64x8xf32> -> vector<64x8xf32>
    %c0_10 = arith.constant 0 : index
    %c0_11 = arith.constant 0 : index
    %13 = vector.load %arg6[%c0_10, %c0_11] : memref<1x8xf32, #tpu.memory_space<vmem>>, vector<1x8xf32>
    %14 = vector.broadcast %13 : vector<1x8xf32> to vector<64x8xf32>
    %15 = arith.addf %12, %14 : vector<64x8xf32>
    %16 = vector.shape_cast %15 : vector<64x8xf32> to vector<8x8x8xf32>
    %17 = vector.extract_strided_slice %16 {offsets = [0, 0, 0], sizes = [8, 8, 4], strides = [1, 1, 1]} : vector<8x8x8xf32> to vector<8x8x4xf32>
    %18 = vector.extract_strided_slice %16 {offsets = [0, 0, 4], sizes = [8, 8, 4], strides = [1, 1, 1]} : vector<8x8x8xf32> to vector<8x8x4xf32>
    %19 = arith.negf %17 : vector<8x8x4xf32>
    %20 = math.exp %19 : vector<8x8x4xf32>
    %cst_12 = arith.constant 1.000000e+00 : f32
    %21 = vector.broadcast %cst_12 : f32 to vector<8x8x4xf32>
    %22 = arith.addf %21, %20 : vector<8x8x4xf32>
    %23 = arith.divf %21, %22 : vector<8x8x4xf32>
    %cst_13 = arith.constant dense<0xFF800000> : vector<8x4xf32>
    %24 = vector.multi_reduction <maximumf>, %18, %cst_13 [1] : vector<8x8x4xf32> to vector<8x4xf32>
    %25 = vector.shape_cast %24 : vector<8x4xf32> to vector<8x1x4xf32>
    %26 = vector.broadcast %25 : vector<8x1x4xf32> to vector<8x8x4xf32>
    %27 = arith.subf %18, %26 : vector<8x8x4xf32>
    %28 = math.exp %27 : vector<8x8x4xf32>
    %cst_14 = arith.constant dense<0.000000e+00> : vector<8x4xf32>
    %29 = vector.multi_reduction <add>, %28, %cst_14 [1] : vector<8x8x4xf32> to vector<8x4xf32>
    %30 = vector.shape_cast %29 : vector<8x4xf32> to vector<8x1x4xf32>
    %31 = math.log %30 : vector<8x1x4xf32>
    %32 = arith.addf %25, %31 : vector<8x1x4xf32>
    %33 = vector.broadcast %32 : vector<8x1x4xf32> to vector<8x8x4xf32>
    %34 = arith.subf %18, %33 : vector<8x8x4xf32>
    %cst_15 = arith.constant dense<0.000000e+00> : vector<8x4xf32>
    %35 = vector.multi_reduction <add>, %34, %cst_15 [1] : vector<8x8x4xf32> to vector<8x4xf32>
    %36 = vector.shape_cast %35 : vector<8x4xf32> to vector<8x1x4xf32>
    %cst_16 = arith.constant 8.000000e+00 : f32
    %37 = vector.broadcast %cst_16 : f32 to vector<8x1x4xf32>
    %38 = arith.divf %36, %37 : vector<8x1x4xf32>
    %cst_17 = arith.constant 1.000000e+02 : f32
    %39 = vector.broadcast %cst_17 : f32 to vector<8x1x4xf32>
    %40 = arith.mulf %39, %38 : vector<8x1x4xf32>
    %41 = vector.broadcast %40 : vector<8x1x4xf32> to vector<8x8x4xf32>
    %42 = arith.subf %34, %41 : vector<8x8x4xf32>
    %43 = arith.negf %42 : vector<8x8x4xf32>
    %44 = math.exp %43 : vector<8x8x4xf32>
    %cst_18 = arith.constant 1.000000e+00 : f32
    %45 = vector.broadcast %cst_18 : f32 to vector<8x8x4xf32>
    %46 = arith.addf %45, %44 : vector<8x8x4xf32>
    %47 = arith.divf %45, %46 : vector<8x8x4xf32>
    %c0_19 = arith.constant 0 : index
    %c0_20 = arith.constant 0 : index
    %48 = vector.load %arg2[%c0_19, %c0_20] : memref<8x8xf32, #tpu.memory_space<vmem>>, vector<8x8xf32>
    %49 = vector.shape_cast %48 : vector<8x8xf32> to vector<8x8x1xf32>
    %cst_21 = arith.constant 1.000000e+00 : f32
    %50 = vector.broadcast %cst_21 : f32 to vector<8x8x4xf32>
    %51 = arith.subf %50, %23 : vector<8x8x4xf32>
    %52 = vector.broadcast %49 : vector<8x8x1xf32> to vector<8x8x4xf32>
    %53 = arith.maximumf %51, %52 : vector<8x8x4xf32>
    %cst_22 = arith.constant 1.000000e+00 : f32
    %54 = vector.broadcast %cst_22 : f32 to vector<8x8x1xf32>
    %55 = arith.subf %54, %49 : vector<8x8x1xf32>
    %56 = vector.broadcast %55 : vector<8x8x1xf32> to vector<8x8x4xf32>
    %57 = arith.maximumf %23, %56 : vector<8x8x4xf32>
    %58 = arith.minimumf %53, %57 : vector<8x8x4xf32>
    %cst_23 = arith.constant 1.000000e+00 : f32
    %59 = vector.broadcast %cst_23 : f32 to vector<8x8x4xf32>
    %60 = arith.subf %59, %47 : vector<8x8x4xf32>
    %61 = arith.maximumf %58, %60 : vector<8x8x4xf32>
    %cst_24 = arith.constant dense<0x7F800000> : vector<8x4xf32>
    %62 = vector.multi_reduction <minimumf>, %61, %cst_24 [1] : vector<8x8x4xf32> to vector<8x4xf32>
    %c0_25 = arith.constant 0 : index
    %c0_26 = arith.constant 0 : index
    %63 = vector.load %arg7[%c0_25, %c0_26] : memref<8x4xf32, #tpu.memory_space<vmem>>, vector<8x4xf32>
    tpu.vector_store %arg7[%c0_25, %c0_26], %62 {strides = array<i32>} : memref<8x4xf32, #tpu.memory_space<vmem>>, vector<8x4xf32>,
    return
  }
  func.func @transform_0(%arg0: i32) -> (i32, i32) {
    %c0_i32 = arith.constant 0 : i32
    %c0_i32_0 = arith.constant 0 : i32
    return %arg0, %c0_i32 : i32, i32
  }
  func.func @transform_1(%arg0: i32) -> (i32, i32) {
    %c0_i32 = arith.constant 0 : i32
    %c0_i32_0 = arith.constant 0 : i32
    return %arg0, %c0_i32 : i32, i32
  }
  func.func @transform_2(%arg0: i32) -> (i32, i32) {
    %c0_i32 = arith.constant 0 : i32
    %c0_i32_0 = arith.constant 0 : i32
    %c0_i32_1 = arith.constant 0 : i32
    return %c0_i32, %c0_i32_0 : i32, i32
  }
  func.func @transform_3(%arg0: i32) -> (i32, i32) {
    %c0_i32 = arith.constant 0 : i32
    %c0_i32_0 = arith.constant 0 : i32
    %c0_i32_1 = arith.constant 0 : i32
    return %c0_i32, %c0_i32_0 : i32, i32
  }
  func.func @transform_4(%arg0: i32) -> (i32, i32) {
    %c0_i32 = arith.constant 0 : i32
    %c0_i32_0 = arith.constant 0 : i32
    %c0_i32_1 = arith.constant 0 : i32
    return %c0_i32, %c0_i32_0 : i32, i32
  }
  func.func @transform_5(%arg0: i32) -> (i32, i32) {
    %c0_i32 = arith.constant 0 : i32
    %c0_i32_0 = arith.constant 0 : i32
    %c0_i32_1 = arith.constant 0 : i32
    return %c0_i32, %c0_i32_0 : i32, i32
  }
  func.func @transform_6(%arg0: i32) -> (i32, i32) {
    %c0_i32 = arith.constant 0 : i32
    %c0_i32_0 = arith.constant 0 : i32
    return %arg0, %c0_i32 : i32, i32
  }
}

</mosaic_0001>

<llo_original>
// kernel: tpu_custom_call.1
$region0: #{tpu_custom_call.1}
  #allocation0 [shape = 'u32[]', space=smem, size = 0x4, offset = 0x4, fixed_abs, tag = 'smem constant byte address 0x4 - core index']
  #allocation1 [shape = 'u32[144,128]{1,0:T(1,128)}', space=vmem, size = 0x12000, scoped, tag = 'internal scratch']
  %s0 = inlined_call_operand.vmem [shape: f32[128,32], index: 0, kind: input, shape index: {}]
  %s1 = inlined_call_operand.vmem [shape: f32[16,8], index: 1, kind: input, shape index: {}]
  %s2 = inlined_call_operand.vmem [shape: f32[32,64], index: 2, kind: input, shape index: {}]
  %s3 = inlined_call_operand.vmem [shape: f32[1,64], index: 3, kind: input, shape index: {}]
  %s4 = inlined_call_operand.vmem [shape: f32[64,8], index: 4, kind: input, shape index: {}]
  %s5 = inlined_call_operand.vmem [shape: f32[1,8], index: 5, kind: input, shape index: {}]
  %s6 = inlined_call_operand.vmem [shape: f32[16,4], index: 6, kind: output, shape index: {}]
  %s7 = sld [smem:[#allocation0]]
  $region57: #{tpu_custom_call.1} parent=0
    _
  %s9 = ssub.s32 1, %s7
  %s10 = scalar_select 0, %s9, %s7
  loop: start=0, step=1, limit=4
  $region2: #{tpu_custom_call.1} parent=0 // loop_pre_header
    _
  $region3: #{tpu_custom_call.1} parent=0 // loop_header
    %s12 = sphi 0, %s16
    %p13 = scmp.ge.s32.totalorder %s12, 4
    %s22 = sphi 0, %s24
    %s25 = sphi 0, %s22
    %s26 = sphi 0, %s25
    %s42 = sphi 0, %s26
    %s48 = sphi 0, %s50
    %s51 = sphi 0, %s48
    %s52 = sphi 0, %s51
    %s68 = sphi 0, %s52
    %s72 = sphi 0, %s72
    %s74 = sphi 0, %s72
    %s75 = sphi 0, %s74
    %s89 = sphi 0, %s75
    %s93 = sphi 0, %s93
    %s95 = sphi 0, %s93
    %s96 = sphi 0, %s95
    %s110 = sphi 0, %s96
    %s114 = sphi 0, %s114
    %s116 = sphi 0, %s114
    %s117 = sphi 0, %s116
    %s131 = sphi 0, %s117
    %s135 = sphi 0, %s135
    %s137 = sphi 0, %s135
    %s138 = sphi 0, %s137
    %s152 = sphi 0, %s138
    %s158 = sphi 0, %s160
    %s161 = sphi 0, %s158
    %s162 = sphi 0, %s161
    %s178 = sphi 0, %s162
  $region4: #{tpu_custom_call.1} parent=0 // loop_header_branch
    %15 = sbr.rel (%p13) target = $region8
  $region5: #{tpu_custom_call.1} parent=0 // loop_body
    %s17 = ssub.s32 %s12, 1
    %s18 = ssub.s32 %s12, 2
    %s19 = sadd.s32 %s12, 1
    %s20 = ssub.s32 %s12, %s19
    %p21 = scmp.eq.s32.totalorder %s20, 0
    %s23 = sadd.s32 %s22, 1
    %s24 = scalar_select %p21, %s22, %s23
    %p27 = pneg %p21
    %p28 = scmp.eq.s32.totalorder %s12, 1
    %p29 = por %p27, %p28
    %p30 = scmp.ne.s32.totalorder %s22, %s25
    %p31 = scmp.eq.s32.totalorder %s12, 0
    %p32 = por %p30, %p31
    %p33 = scmp.ne.s32.totalorder %s22, %s25
    %p34 = scmp.eq.s32.totalorder %s17, 1
    %p35 = por %p33, %p34
    %p36 = scmp.ne.s32.totalorder %s25, %s26
    %p37 = scmp.eq.s32.totalorder %s17, 0
    %p38 = por %p36, %p37
    %p39 = scmp.ne.s32.totalorder %s25, %s26
    %p40 = scmp.eq.s32.totalorder %s18, 1
    %p41 = por %p39, %p40
    %p43 = scmp.ne.s32.totalorder %s26, %s42
    %p44 = scmp.eq.s32.totalorder %s18, 0
    %p45 = por %p43, %p44
    %s46 = ssub.s32 %s12, %s19
    %p47 = scmp.eq.s32.totalorder %s46, 0
    %s49 = sadd.s32 %s48, 1
    %s50 = scalar_select %p47, %s48, %s49
    %p53 = pneg %p47
    %p54 = scmp.eq.s32.totalorder %s12, 1
    %p55 = por %p53, %p54
    %p56 = scmp.ne.s32.totalorder %s48, %s51
    %p57 = scmp.eq.s32.totalorder %s12, 0
    %p58 = por %p56, %p57
    %p59 = scmp.ne.s32.totalorder %s48, %s51
    %p60 = scmp.eq.s32.totalorder %s17, 1
    %p61 = por %p59, %p60
    %p62 = scmp.ne.s32.totalorder %s51, %s52
    %p63 = scmp.eq.s32.totalorder %s17, 0
    %p64 = por %p62, %p63
    %p65 = scmp.ne.s32.totalorder %s51, %s52
    %p66 = scmp.eq.s32.totalorder %s18, 1
    %p67 = por %p65, %p66
    %p69 = scmp.ne.s32.totalorder %s52, %s68
    %p70 = scmp.eq.s32.totalorder %s18, 0
    %p71 = por %p69, %p70
    %s73 = sadd.s32 %s72, 1
    %p76 = scmp.eq.s32.totalorder %s12, 1
    %p77 = scmp.ne.s32.totalorder %s72, %s74
    %p78 = scmp.eq.s32.totalorder %s12, 0
    %p79 = por %p77, %p78
    %p80 = scmp.ne.s32.totalorder %s72, %s74
    %p81 = scmp.eq.s32.totalorder %s17, 1
    %p82 = por %p80, %p81
    %p83 = scmp.ne.s32.totalorder %s74, %s75
    %p84 = scmp.eq.s32.totalorder %s17, 0
    %p85 = por %p83, %p84
    %p86 = scmp.ne.s32.totalorder %s74, %s75
    %p87 = scmp.eq.s32.totalorder %s18, 1
    %p88 = por %p86, %p87
    %p90 = scmp.ne.s32.totalorder %s75, %s89
    %p91 = scmp.eq.s32.totalorder %s18, 0
    %p92 = por %p90, %p91
    %s94 = sadd.s32 %s93, 1
    %p97 = scmp.eq.s32.totalorder %s12, 1
    %p98 = scmp.ne.s32.totalorder %s93, %s95
    %p99 = scmp.eq.s32.totalorder %s12, 0
    %p100 = por %p98, %p99
    %p101 = scmp.ne.s32.totalorder %s93, %s95
    %p102 = scmp.eq.s32.totalorder %s17, 1
    %p103 = por %p101, %p102
    %p104 = scmp.ne.s32.totalorder %s95, %s96
    %p105 = scmp.eq.s32.totalorder %s17, 0
    %p106 = por %p104, %p105
    %p107 = scmp.ne.s32.totalorder %s95, %s96
    %p108 = scmp.eq.s32.totalorder %s18, 1
    %p109 = por %p107, %p108
    %p111 = scmp.ne.s32.totalorder %s96, %s110
    %p112 = scmp.eq.s32.totalorder %s18, 0
    %p113 = por %p111, %p112
    %s115 = sadd.s32 %s114, 1
    %p118 = scmp.eq.s32.totalorder %s12, 1
    %p119 = scmp.ne.s32.totalorder %s114, %s116
    %p120 = scmp.eq.s32.totalorder %s12, 0
    %p121 = por %p119, %p120
    %p122 = scmp.ne.s32.totalorder %s114, %s116
    %p123 = scmp.eq.s32.totalorder %s17, 1
    %p124 = por %p122, %p123
    %p125 = scmp.ne.s32.totalorder %s116, %s117
    %p126 = scmp.eq.s32.totalorder %s17, 0
    %p127 = por %p125, %p126
    %p128 = scmp.ne.s32.totalorder %s116, %s117
    %p129 = scmp.eq.s32.totalorder %s18, 1
    %p130 = por %p128, %p129
    %p132 = scmp.ne.s32.totalorder %s117, %s131
    %p133 = scmp.eq.s32.totalorder %s18, 0
    %p134 = por %p132, %p133
    %s136 = sadd.s32 %s135, 1
    %p139 = scmp.eq.s32.totalorder %s12, 1
    %p140 = scmp.ne.s32.totalorder %s135, %s137
    %p141 = scmp.eq.s32.totalorder %s12, 0
    %p142 = por %p140, %p141
    %p143 = scmp.ne.s32.totalorder %s135, %s137
    %p144 = scmp.eq.s32.totalorder %s17, 1
    %p145 = por %p143, %p144
    %p146 = scmp.ne.s32.totalorder %s137, %s138
    %p147 = scmp.eq.s32.totalorder %s17, 0
    %p148 = por %p146, %p147
    %p149 = scmp.ne.s32.totalorder %s137, %s138
    %p150 = scmp.eq.s32.totalorder %s18, 1
    %p151 = por %p149, %p150
    %p153 = scmp.ne.s32.totalorder %s138, %s152
    %p154 = scmp.eq.s32.totalorder %s18, 0
    %p155 = por %p153, %p154
    %s156 = ssub.s32 %s12, %s19
    %p157 = scmp.eq.s32.totalorder %s156, 0
    %s159 = sadd.s32 %s158, 1
    %s160 = scalar_select %p157, %s158, %s159
    %p163 = pneg %p157
    %p164 = scmp.eq.s32.totalorder %s12, 1
    %p165 = por %p163, %p164
    %p166 = scmp.ne.s32.totalorder %s158, %s161
    %p167 = scmp.eq.s32.totalorder %s12, 0
    %p168 = por %p166, %p167
    %p169 = scmp.ne.s32.totalorder %s158, %s161
    %p170 = scmp.eq.s32.totalorder %s17, 1
    %p171 = por %p169, %p170
    %p172 = scmp.ne.s32.totalorder %s161, %s162
    %p173 = scmp.eq.s32.totalorder %s17, 0
    %p174 = por %p172, %p173
    %p175 = scmp.ne.s32.totalorder %s161, %s162
    %p176 = scmp.eq.s32.totalorder %s18, 1
    %p177 = por %p175, %p176
    %p179 = scmp.ne.s32.totalorder %s162, %s178
    %p180 = scmp.eq.s32.totalorder %s18, 0
    %p181 = por %p179, %p180
    %p182 = scmp.le.s32.totalorder 1, %s12
    %p183 = scmp.lt.s32.totalorder %s12, 3
    %p184 = pnand %p182, %p183
    %p185 = pneg %p184
    // Predicated region
    $region9: #{tpu_custom_call.1} parent=5 // pred_check
      _
    $region10: #{tpu_custom_call.1} parent=5 // pred_check_branch
      %187 = sbr.rel (%p184) target = $region12
    $region11: #{tpu_custom_call.1} parent=5 // pred_region
      %s188 = ssub.s32 %s12, 1
      // Predicated region
      $region13: #{tpu_custom_call.1} parent=11 // pred_check
        %p189 = pneg %p85
      $region14: #{tpu_custom_call.1} parent=11 // pred_check_branch
        %191 = sbr.rel (%p189) target = $region16
      $region15: #{tpu_custom_call.1} parent=11 // pred_region
        _
      $region16: #{tpu_custom_call.1} parent=11 // pred_fallthru
        _
      // Predicated region
      $region17: #{tpu_custom_call.1} parent=11 // pred_check
        %p192 = pneg %p106
      $region18: #{tpu_custom_call.1} parent=11 // pred_check_branch
        %194 = sbr.rel (%p192) target = $region20
      $region19: #{tpu_custom_call.1} parent=11 // pred_region
        _
      $region20: #{tpu_custom_call.1} parent=11 // pred_fallthru
        _
      // Predicated region
      $region21: #{tpu_custom_call.1} parent=11 // pred_check
        %p195 = pneg %p127
      $region22: #{tpu_custom_call.1} parent=11 // pred_check_branch
        %197 = sbr.rel (%p195) target = $region24
      $region23: #{tpu_custom_call.1} parent=11 // pred_region
        _
      $region24: #{tpu_custom_call.1} parent=11 // pred_fallthru
        _
      // Predicated region
      $region25: #{tpu_custom_call.1} parent=11 // pred_check
        %p198 = pneg %p148
      $region26: #{tpu_custom_call.1} parent=11 // pred_check_branch
        %200 = sbr.rel (%p198) target = $region28
      $region27: #{tpu_custom_call.1} parent=11 // pred_region
        _
      $region28: #{tpu_custom_call.1} parent=11 // pred_fallthru
        _
    $region12: #{tpu_custom_call.1} parent=5 // pred_fallthru
      _
    %p201 = scmp.lt.s32.totalorder %s12, 2
    // Predicated region
    $region29: #{tpu_custom_call.1} parent=5 // pred_check
      %p202 = pneg %p201
    $region30: #{tpu_custom_call.1} parent=5 // pred_check_branch
      %204 = sbr.rel (%p202) target = $region32
    $region31: #{tpu_custom_call.1} parent=5 // pred_region
      // Predicated region
      $region33: #{tpu_custom_call.1} parent=31 // pred_check
        %p205 = pneg %p32
      $region34: #{tpu_custom_call.1} parent=31 // pred_check_branch
        %207 = sbr.rel (%p205) target = $region36
      $region35: #{tpu_custom_call.1} parent=31 // pred_region
        %s208 = smul.u32 8, %s12
        %p209 = scmp.lt.s32.totalorder %s208, 15
        %s210 = scalar_select %p209, %s208, 15
        %s211 = smul.addr %s210, 8
        %s212 = scalar_lea.vmem %s0, %s211
        %s213 = smul.u32 8, %s12
      $region36: #{tpu_custom_call.1} parent=31 // pred_fallthru
        _
      // Predicated region
      $region37: #{tpu_custom_call.1} parent=31 // pred_check
        %p214 = pneg %p58
      $region38: #{tpu_custom_call.1} parent=31 // pred_check_branch
        %216 = sbr.rel (%p214) target = $region40
      $region39: #{tpu_custom_call.1} parent=31 // pred_region
        %p217 = scmp.lt.s32.totalorder %s12, 1
        %s218 = scalar_select %p217, %s12, 1
        %s219 = smul.addr %s218, 8
        %s220 = scalar_lea.vmem %s1, %s219
      $region40: #{tpu_custom_call.1} parent=31 // pred_fallthru
        _
    $region32: #{tpu_custom_call.1} parent=5 // pred_fallthru
      _
    %p221 = scmp.le.s32.totalorder 1, %s12
    %p222 = scmp.lt.s32.totalorder %s12, 3
    %p223 = pnand %p221, %p222
    %p224 = pneg %p223
    // Predicated region
    $region41: #{tpu_custom_call.1} parent=5 // pred_check
      _
    $region42: #{tpu_custom_call.1} parent=5 // pred_check_branch
      %226 = sbr.rel (%p223) target = $region44
    $region43: #{tpu_custom_call.1} parent=5 // pred_region
      %s227 = ssub.s32 %s12, 1
      %s228 = smul.u32 8, %s17
      %p229 = scmp.lt.s32.totalorder %s228, 15
      %s230 = scalar_select %p229, %s228, 15
      %s231 = smul.addr %s230, 8
      %s232 = scalar_lea.vmem %s0, %s231
      %p233 = pneg %p38
      %p234 = pneg %p35
      %p235 = scmp.lt.s32.totalorder %s17, 1
      %s236 = scalar_select %p235, %s17, 1
      %s237 = smul.addr %s236, 8
      %s238 = scalar_lea.vmem %s1, %s237
      %p239 = pneg %p64
      %p240 = pneg %p61
      %p241 = pneg %p85
      %p242 = pneg %p82
      %p243 = pneg %p106
      %p244 = pneg %p103
      %p245 = pneg %p127
      %p246 = pneg %p124
      %p247 = pneg %p148
      %p248 = pneg %p145
      %p249 = pneg %p174
      %p250 = pneg %p171
      %p251 = scmp.lt.s32.totalorder %s17, 1
      %s252 = scalar_select %p251, %s17, 1
      %s253 = smul.addr %s252, 8
      %s254 = scalar_lea.vmem %s6, %s253
      %s255 = smul.u32 8, %s17
      %p256 = scmp.lt.s32.totalorder %s255, 15
      %s257 = scalar_select %p256, %s255, 15
      %s258 = smul.addr %s257, 8
      %s259 = scalar_lea.vmem %s0, %s258
      %s260 = smul.u32 8, %s17
      %p261 = scmp.lt.s32.totalorder %s17, 1
      %s262 = scalar_select %p261, %s17, 1
      %s263 = smul.addr %s262, 8
      %s264 = scalar_lea.vmem %s1, %s263
      %p265 = scmp.lt.s32.totalorder %s17, 1
      %s266 = scalar_select %p265, %s17, 1
      %s267 = smul.addr %s266, 8
      %s268 = scalar_lea.vmem %s6, %s267
      %v269 = vld [vmem:[%s259] sm:$0xff]
      %v270 = vld [vmem:[%s259 + $0x8] sm:$0xff]
      %v271 = vld [vmem:[%s259 + $0x10] sm:$0xff]
      %v272 = vld [vmem:[%s259 + $0x18] sm:$0xff]
      %v273 = vld [vmem:[%s259 + $0x20] sm:$0xff]
      %v274 = vld [vmem:[%s259 + $0x28] sm:$0xff]
      %v275 = vld [vmem:[%s259 + $0x30] sm:$0xff]
      %v276 = vld [vmem:[%s259 + $0x38] sm:$0xff]
      %v277 = vld [vmem:[%s2] sm:$0xff]
      %v278 = vld [vmem:[%s2 + $0x8] sm:$0xff]
      %v279 = vld [vmem:[%s2 + $0x10] sm:$0xff]
      %v280 = vld [vmem:[%s2 + $0x18] sm:$0xff]
      %v281 = vld [vmem:[%s3] sm:$0x1]
      %v283 = vlaneseq
      %v284 = vshrl.u32 %v283, 7
      %v285 = vsub.s32 0, %v284
      %v286 = vrot.slane %v281, %v285
      %vm288 = vcmask 261120
      %v290 = vsel %vm288, %v269, 0
      %v293 = vsel %vm288, %v270, 0
      %v296 = vsel %vm288, %v271, 0
      %v299 = vsel %vm288, %v272, 0
      %v302 = vsel %vm288, %v273, 0
      %v305 = vsel %vm288, %v274, 0
      %v308 = vsel %vm288, %v275, 0
      %v311 = vsel %vm288, %v276, 0
      %313 = vmatprep.subr.mxu0 0.0
      %314 = vmatpush1.msra.mxu0 0.0
      %315 = vmatprep.subr.mxu0 0.0
      %316 = vmatpush1.msra.mxu0 0.0
      %317 = vmatprep.subr.mxu0 0.0
      %318 = vmatpush1.msra.mxu0 0.0
      %319 = vmatprep.subr.mxu0 0.0
      %320 = vmatpush1.msra.mxu0 0.0
      %321 = vmatprep.subr.mxu0 0.0
      %322 = vmatpush1.msra.mxu0 0.0
      %323 = vmatprep.subr.mxu0 0.0
      %324 = vmatpush1.msra.mxu0 0.0
      %325 = vmatprep.subr.mxu0 0.0
      %326 = vmatpush1.msra.mxu0 0.0
      %327 = vmatprep.subr.mxu0 0.0
      %328 = vmatpush1.msra.mxu0 0.0
      %329 = vmatprep.subr.mxu0 0.0
      %330 = vmatpush1.msra.mxu0 0.0
      %331 = vmatprep.subr.mxu0 0.0
      %332 = vmatpush1.msra.mxu0 0.0
      %333 = vmatprep.subr.mxu0 0.0
      %334 = vmatpush1.msra.mxu0 0.0
      %335 = vmatprep.subr.mxu0 0.0
      %336 = vmatpush1.msra.mxu0 0.0
      %337 = vmatprep.subr.mxu0 0.0
      %338 = vmatpush1.msra.mxu0 %v280
      %339 = vmatprep.subr.mxu0 0.0
      %340 = vmatpush1.msra.mxu0 %v279
      %341 = vmatprep.subr.mxu0 0.0
      %342 = vmatpush1.msra.mxu0 %v278
      %343 = vmatprep.subr.mxu0 0.0
      %344 = vmatpush1.msra.mxu0 %v277
      %345 = vmatprep.subr.mxu0 0.0
      %346 = vmatpush2.msra.mxu0 0.0
      %347 = vmatprep.subr.mxu0 0.0
      %348 = vmatpush2.msra.mxu0 0.0
      %349 = vmatprep.subr.mxu0 0.0
      %350 = vmatpush2.msra.mxu0 0.0
      %351 = vmatprep.subr.mxu0 0.0
      %352 = vmatpush2.msra.mxu0 0.0
      %353 = vmatprep.subr.mxu0 0.0
      %354 = vmatpush2.msra.mxu0 0.0
      %355 = vmatprep.subr.mxu0 0.0
      %356 = vmatpush2.msra.mxu0 0.0
      %357 = vmatprep.subr.mxu0 0.0
      %358 = vmatpush2.msra.mxu0 0.0
      %359 = vmatprep.subr.mxu0 0.0
      %360 = vmatpush2.msra.mxu0 0.0
      %361 = vmatprep.subr.mxu0 0.0
      %362 = vmatpush2.msra.mxu0 0.0
      %363 = vmatprep.subr.mxu0 0.0
      %364 = vmatpush2.msra.mxu0 0.0
      %365 = vmatprep.subr.mxu0 0.0
      %366 = vmatpush2.msra.mxu0 0.0
      %367 = vmatprep.subr.mxu0 0.0
      %368 = vmatpush2.msra.mxu0 0.0
      %369 = vmatprep.subr.mxu0 0.0
      %370 = vmatpush2.msra.mxu0 0.0
      %371 = vmatprep.subr.mxu0 0.0
      %372 = vmatpush2.msra.mxu0 0.0
      %373 = vmatprep.subr.mxu0 0.0
      %374 = vmatpush2.msra.mxu0 0.0
      %375 = vmatprep.subr.mxu0 0.0
      %376 = vmatpush2.msra.mxu0 0.0
      %377 = vmatprep.mubr.f32.mxu0 0.0
      %378 = vmatmul.mubr.f32.gmra.mxu0 %v290
      %v379 = vpop.f32.mrf.mxu0
      %v380 = vadd.f32 %v286, %v379
      %v381 = vpop.f32.mrf.mxu0
      %382 = vmatprep.mubr.f32.mxu0 0.0
      %383 = vmatmul.mubr.f32.gmra.mxu0 %v293
      %v384 = vpop.f32.mrf.mxu0
      %v385 = vadd.f32 %v286, %v384
      %v386 = vpop.f32.mrf.mxu0
      %387 = vmatprep.mubr.f32.mxu0 0.0
      %388 = vmatmul.mubr.f32.gmra.mxu0 %v296
      %v389 = vpop.f32.mrf.mxu0
      %v390 = vadd.f32 %v286, %v389
      %v391 = vpop.f32.mrf.mxu0
      %392 = vmatprep.mubr.f32.mxu0 0.0
      %393 = vmatmul.mubr.f32.gmra.mxu0 %v299
      %v394 = vpop.f32.mrf.mxu0
      %v395 = vadd.f32 %v286, %v394
      %v396 = vpop.f32.mrf.mxu0
      %397 = vmatprep.mubr.f32.mxu0 0.0
      %398 = vmatmul.mubr.f32.gmra.mxu0 %v302
      %v399 = vpop.f32.mrf.mxu0
      %v400 = vadd.f32 %v286, %v399
      %v401 = vpop.f32.mrf.mxu0
      %402 = vmatprep.mubr.f32.mxu0 0.0
      %403 = vmatmul.mubr.f32.gmra.mxu0 %v305
      %v404 = vpop.f32.mrf.mxu0
      %v405 = vadd.f32 %v286, %v404
      %v406 = vpop.f32.mrf.mxu0
      %407 = vmatprep.mubr.f32.mxu0 0.0
      %408 = vmatmul.mubr.f32.gmra.mxu0 %v308
      %v409 = vpop.f32.mrf.mxu0
      %v410 = vadd.f32 %v286, %v409
      %v411 = vpop.f32.mrf.mxu0
      %412 = vmatprep.mubr.f32.mxu0 0.0
      %413 = vmatmul.mubr.f32.gmra.mxu0 %v311
      %v414 = vpop.f32.mrf.mxu0
      %v415 = vadd.f32 %v286, %v414
      %v416 = vpop.f32.mrf.mxu0
      %417 = vdwg.mxu0
      %vm418 = vcmp.gt.f32.partialorder %v380, 0.0
      %vm419 = vcmp.gt.f32.partialorder %v385, 0.0
      %vm420 = vcmp.gt.f32.partialorder %v390, 0.0
      %vm421 = vcmp.gt.f32.partialorder %v395, 0.0
      %vm422 = vcmp.gt.f32.partialorder %v400, 0.0
      %vm423 = vcmp.gt.f32.partialorder %v405, 0.0
      %vm424 = vcmp.gt.f32.partialorder %v410, 0.0
      %vm425 = vcmp.gt.f32.partialorder %v415, 0.0
      %v426 = vmul.f32 %v380, 0.01
      %v427 = vmul.f32 %v385, 0.01
      %v428 = vmul.f32 %v390, 0.01
      %v429 = vmul.f32 %v395, 0.01
      %v430 = vmul.f32 %v400, 0.01
      %v431 = vmul.f32 %v405, 0.01
      %v432 = vmul.f32 %v410, 0.01
      %v433 = vmul.f32 %v415, 0.01
      %v434 = vsel %vm418, %v380, %v426
      %v435 = vsel %vm419, %v385, %v427
      %v436 = vsel %vm420, %v390, %v428
      %v437 = vsel %vm421, %v395, %v429
      %v438 = vsel %vm422, %v400, %v430
      %v439 = vsel %vm423, %v405, %v431
      %v440 = vsel %vm424, %v410, %v432
      %v441 = vsel %vm425, %v415, %v433
      %v442 = vld [vmem:[%s4] sm:$0xff]
      %v443 = vld [vmem:[%s4 + $0x8] sm:$0xff]
      %v444 = vld [vmem:[%s4 + $0x10] sm:$0xff]
      %v445 = vld [vmem:[%s4 + $0x18] sm:$0xff]
      %v446 = vld [vmem:[%s4 + $0x20] sm:$0xff]
      %v447 = vld [vmem:[%s4 + $0x28] sm:$0xff]
      %v448 = vld [vmem:[%s4 + $0x30] sm:$0xff]
      %v449 = vld [vmem:[%s4 + $0x38] sm:$0xff]
      %v450 = vld [vmem:[%s5] sm:$0x1]
      %v452 = vlaneseq
      %v453 = vshrl.u32 %v452, 7
      %v454 = vsub.s32 0, %v453
      %v455 = vrot.slane %v450, %v454
      %vm457 = vcmask 523264
      %v459 = vsel %vm457, %v434, 0
      %v462 = vsel %vm457, %v435, 0
      %v465 = vsel %vm457, %v436, 0
      %v468 = vsel %vm457, %v437, 0
      %v471 = vsel %vm457, %v438, 0
      %v474 = vsel %vm457, %v439, 0
      %v477 = vsel %vm457, %v440, 0
      %v480 = vsel %vm457, %v441, 0
      %482 = vmatprep.subr.mxu0 0.0
      %483 = vmatpush1.msra.mxu0 0.0
      %484 = vmatprep.subr.mxu0 0.0
      %485 = vmatpush1.msra.mxu0 0.0
      %486 = vmatprep.subr.mxu0 0.0
      %487 = vmatpush1.msra.mxu0 0.0
      %488 = vmatprep.subr.mxu0 0.0
      %489 = vmatpush1.msra.mxu0 0.0
      %490 = vmatprep.subr.mxu0 0.0
      %491 = vmatpush1.msra.mxu0 0.0
      %492 = vmatprep.subr.mxu0 0.0
      %493 = vmatpush1.msra.mxu0 0.0
      %494 = vmatprep.subr.mxu0 0.0
      %495 = vmatpush1.msra.mxu0 0.0
      %496 = vmatprep.subr.mxu0 0.0
      %497 = vmatpush1.msra.mxu0 0.0
      %498 = vmatprep.subr.mxu0 0.0
      %499 = vmatpush1.msra.mxu0 %v449
      %500 = vmatprep.subr.mxu0 0.0
      %501 = vmatpush1.msra.mxu0 %v448
      %502 = vmatprep.subr.mxu0 0.0
      %503 = vmatpush1.msra.mxu0 %v447
      %504 = vmatprep.subr.mxu0 0.0
      %505 = vmatpush1.msra.mxu0 %v446
      %506 = vmatprep.subr.mxu0 0.0
      %507 = vmatpush1.msra.mxu0 %v445
      %508 = vmatprep.subr.mxu0 0.0
      %509 = vmatpush1.msra.mxu0 %v444
      %510 = vmatprep.subr.mxu0 0.0
      %511 = vmatpush1.msra.mxu0 %v443
      %512 = vmatprep.subr.mxu0 0.0
      %513 = vmatpush1.msra.mxu0 %v442
      %514 = vmatprep.subr.mxu0 0.0
      %515 = vmatpush2.msra.mxu0 0.0
      %516 = vmatprep.subr.mxu0 0.0
      %517 = vmatpush2.msra.mxu0 0.0
      %518 = vmatprep.subr.mxu0 0.0
      %519 = vmatpush2.msra.mxu0 0.0
      %520 = vmatprep.subr.mxu0 0.0
      %521 = vmatpush2.msra.mxu0 0.0
      %522 = vmatprep.subr.mxu0 0.0
      %523 = vmatpush2.msra.mxu0 0.0
      %524 = vmatprep.subr.mxu0 0.0
      %525 = vmatpush2.msra.mxu0 0.0
      %526 = vmatprep.subr.mxu0 0.0
      %527 = vmatpush2.msra.mxu0 0.0
      %528 = vmatprep.subr.mxu0 0.0
      %529 = vmatpush2.msra.mxu0 0.0
      %530 = vmatprep.subr.mxu0 0.0
      %531 = vmatpush2.msra.mxu0 0.0
      %532 = vmatprep.subr.mxu0 0.0
      %533 = vmatpush2.msra.mxu0 0.0
      %534 = vmatprep.subr.mxu0 0.0
      %535 = vmatpush2.msra.mxu0 0.0
      %536 = vmatprep.subr.mxu0 0.0
      %537 = vmatpush2.msra.mxu0 0.0
      %538 = vmatprep.subr.mxu0 0.0
      %539 = vmatpush2.msra.mxu0 0.0
      %540 = vmatprep.subr.mxu0 0.0
      %541 = vmatpush2.msra.mxu0 0.0
      %542 = vmatprep.subr.mxu0 0.0
      %543 = vmatpush2.msra.mxu0 0.0
      %544 = vmatprep.subr.mxu0 0.0
      %545 = vmatpush2.msra.mxu0 0.0
      %546 = vmatprep.mubr.f32.mxu0 0.0
      %547 = vmatmul.mubr.f32.gmra.mxu0 %v459
      %v548 = vpop.f32.mrf.mxu0
      %v549 = vadd.f32 %v455, %v548
      %v550 = vpop.f32.mrf.mxu0
      %551 = vmatprep.mubr.f32.mxu0 0.0
      %552 = vmatmul.mubr.f32.gmra.mxu0 %v462
      %v553 = vpop.f32.mrf.mxu0
      %v554 = vadd.f32 %v455, %v553
      %v555 = vpop.f32.mrf.mxu0
      %556 = vmatprep.mubr.f32.mxu0 0.0
      %557 = vmatmul.mubr.f32.gmra.mxu0 %v465
      %v558 = vpop.f32.mrf.mxu0
      %v559 = vadd.f32 %v455, %v558
      %v560 = vpop.f32.mrf.mxu0
      %561 = vmatprep.mubr.f32.mxu0 0.0
      %562 = vmatmul.mubr.f32.gmra.mxu0 %v468
      %v563 = vpop.f32.mrf.mxu0
      %v564 = vadd.f32 %v455, %v563
      %v565 = vpop.f32.mrf.mxu0
      %566 = vmatprep.mubr.f32.mxu0 0.0
      %567 = vmatmul.mubr.f32.gmra.mxu0 %v471
      %v568 = vpop.f32.mrf.mxu0
      %v569 = vadd.f32 %v455, %v568
      %v570 = vpop.f32.mrf.mxu0
      %571 = vmatprep.mubr.f32.mxu0 0.0
      %572 = vmatmul.mubr.f32.gmra.mxu0 %v474
      %v573 = vpop.f32.mrf.mxu0
      %v574 = vadd.f32 %v455, %v573
      %v575 = vpop.f32.mrf.mxu0
      %576 = vmatprep.mubr.f32.mxu0 0.0
      %577 = vmatmul.mubr.f32.gmra.mxu0 %v477
      %v578 = vpop.f32.mrf.mxu0
      %v579 = vadd.f32 %v455, %v578
      %v580 = vpop.f32.mrf.mxu0
      %581 = vmatprep.mubr.f32.mxu0 0.0
      %582 = vmatmul.mubr.f32.gmra.mxu0 %v480
      %v583 = vpop.f32.mrf.mxu0
      %v584 = vadd.f32 %v455, %v583
      %v585 = vpop.f32.mrf.mxu0
      %586 = vdwg.mxu0
      %v587 = vxor.u32 %v549, 2147483648
      %v588 = vxor.u32 %v554, 2147483648
      %v589 = vxor.u32 %v559, 2147483648
      %v590 = vxor.u32 %v564, 2147483648
      %v591 = vxor.u32 %v569, 2147483648
      %v592 = vxor.u32 %v574, 2147483648
      %v593 = vxor.u32 %v579, 2147483648
      %v594 = vxor.u32 %v584, 2147483648
      %v595 = vmul.f32 %v587, 1.442695
      %v596 = vpow.pop %v595
      %v597 = vmul.f32 %v588, 1.442695
      %v598 = vpow.pop %v597
      %v599 = vmul.f32 %v589, 1.442695
      %v600 = vpow.pop %v599
      %v601 = vmul.f32 %v590, 1.442695
      %v602 = vpow.pop %v601
      %v603 = vmul.f32 %v591, 1.442695
      %v604 = vpow.pop %v603
      %v605 = vmul.f32 %v592, 1.442695
      %v606 = vpow.pop %v605
      %v607 = vmul.f32 %v593, 1.442695
      %v608 = vpow.pop %v607
      %v609 = vmul.f32 %v594, 1.442695
      %v610 = vpow.pop %v609
      %v611 = vadd.f32 %v596, 1.0
      %v612 = vadd.f32 %v598, 1.0
      %v613 = vadd.f32 %v600, 1.0
      %v614 = vadd.f32 %v602, 1.0
      %v615 = vadd.f32 %v604, 1.0
      %v616 = vadd.f32 %v606, 1.0
      %v617 = vadd.f32 %v608, 1.0
      %v618 = vadd.f32 %v610, 1.0
      %v619 = vrcp.pop %v611
      %v620 = vmul.f32 1.0, %v619
      %v621 = vrcp.pop %v612
      %v622 = vmul.f32 1.0, %v621
      %v623 = vrcp.pop %v613
      %v624 = vmul.f32 1.0, %v623
      %v625 = vrcp.pop %v614
      %v626 = vmul.f32 1.0, %v625
      %v627 = vrcp.pop %v615
      %v628 = vmul.f32 1.0, %v627
      %v629 = vrcp.pop %v616
      %v630 = vmul.f32 1.0, %v629
      %v631 = vrcp.pop %v617
      %v632 = vmul.f32 1.0, %v631
      %v633 = vrcp.pop %v618
      %v634 = vmul.f32 1.0, %v633
      %vm635 = vcmask 64544
      %v636 = vsel %vm635, %v549, -inf
      %v637 = vrot.slane %v636, 4
      %v638 = vmax.f32 %v636, %v637
      %v639 = vrot.slane %v638, 2
      %v640 = vmax.f32 %v638, %v639
      %v641 = vrot.slane %v640, 1
      %v642 = vmax.f32 %v640, %v641
      %v643 = vsel %vm635, %v554, -inf
      %v644 = vrot.slane %v643, 4
      %v645 = vmax.f32 %v643, %v644
      %v646 = vrot.slane %v645, 2
      %v647 = vmax.f32 %v645, %v646
      %v648 = vrot.slane %v647, 1
      %v649 = vmax.f32 %v647, %v648
      %v650 = vsel %vm635, %v559, -inf
      %v651 = vrot.slane %v650, 4
      %v652 = vmax.f32 %v650, %v651
      %v653 = vrot.slane %v652, 2
      %v654 = vmax.f32 %v652, %v653
      %v655 = vrot.slane %v654, 1
      %v656 = vmax.f32 %v654, %v655
      %v657 = vsel %vm635, %v564, -inf
      %v658 = vrot.slane %v657, 4
      %v659 = vmax.f32 %v657, %v658
      %v660 = vrot.slane %v659, 2
      %v661 = vmax.f32 %v659, %v660
      %v662 = vrot.slane %v661, 1
      %v663 = vmax.f32 %v661, %v662
      %v664 = vsel %vm635, %v569, -inf
      %v665 = vrot.slane %v664, 4
      %v666 = vmax.f32 %v664, %v665
      %v667 = vrot.slane %v666, 2
      %v668 = vmax.f32 %v666, %v667
      %v669 = vrot.slane %v668, 1
      %v670 = vmax.f32 %v668, %v669
      %v671 = vsel %vm635, %v574, -inf
      %v672 = vrot.slane %v671, 4
      %v673 = vmax.f32 %v671, %v672
      %v674 = vrot.slane %v673, 2
      %v675 = vmax.f32 %v673, %v674
      %v676 = vrot.slane %v675, 1
      %v677 = vmax.f32 %v675, %v676
      %v678 = vsel %vm635, %v579, -inf
      %v679 = vrot.slane %v678, 4
      %v680 = vmax.f32 %v678, %v679
      %v681 = vrot.slane %v680, 2
      %v682 = vmax.f32 %v680, %v681
      %v683 = vrot.slane %v682, 1
      %v684 = vmax.f32 %v682, %v683
      %v685 = vsel %vm635, %v584, -inf
      %v686 = vrot.slane %v685, 4
      %v687 = vmax.f32 %v685, %v686
      %v688 = vrot.slane %v687, 2
      %v689 = vmax.f32 %v687, %v688
      %v690 = vrot.slane %v689, 1
      %v691 = vmax.f32 %v689, %v690
      %v692 = vsub.f32 %v549, %v642
      %v693 = vsub.f32 %v554, %v649
      %v694 = vsub.f32 %v559, %v656
      %v695 = vsub.f32 %v564, %v663
      %v696 = vsub.f32 %v569, %v670
      %v697 = vsub.f32 %v574, %v677
      %v698 = vsub.f32 %v579, %v684
      %v699 = vsub.f32 %v584, %v691
      %v700 = vmul.f32 %v692, 1.442695
      %v701 = vpow.pop %v700
      %v702 = vmul.f32 %v693, 1.442695
      %v703 = vpow.pop %v702
      %v704 = vmul.f32 %v694, 1.442695
      %v705 = vpow.pop %v704
      %v706 = vmul.f32 %v695, 1.442695
      %v707 = vpow.pop %v706
      %v708 = vmul.f32 %v696, 1.442695
      %v709 = vpow.pop %v708
      %v710 = vmul.f32 %v697, 1.442695
      %v711 = vpow.pop %v710
      %v712 = vmul.f32 %v698, 1.442695
      %v713 = vpow.pop %v712
      %v714 = vmul.f32 %v699, 1.442695
      %v715 = vpow.pop %v714
      %v716 = vsel %vm635, %v701, 0.0
      %v717 = vrot.slane %v716, 4
      %v718 = vadd.f32 %v716, %v717
      %v719 = vrot.slane %v718, 2
      %v720 = vadd.f32 %v718, %v719
      %v721 = vrot.slane %v720, 1
      %v722 = vadd.f32 %v720, %v721
      %v723 = vsel %vm635, %v703, 0.0
      %v724 = vrot.slane %v723, 4
      %v725 = vadd.f32 %v723, %v724
      %v726 = vrot.slane %v725, 2
      %v727 = vadd.f32 %v725, %v726
      %v728 = vrot.slane %v727, 1
      %v729 = vadd.f32 %v727, %v728
      %v730 = vsel %vm635, %v705, 0.0
      %v731 = vrot.slane %v730, 4
      %v732 = vadd.f32 %v730, %v731
      %v733 = vrot.slane %v732, 2
      %v734 = vadd.f32 %v732, %v733
      %v735 = vrot.slane %v734, 1
      %v736 = vadd.f32 %v734, %v735
      %v737 = vsel %vm635, %v707, 0.0
      %v738 = vrot.slane %v737, 4
      %v739 = vadd.f32 %v737, %v738
      %v740 = vrot.slane %v739, 2
      %v741 = vadd.f32 %v739, %v740
      %v742 = vrot.slane %v741, 1
      %v743 = vadd.f32 %v741, %v742
      %v744 = vsel %vm635, %v709, 0.0
      %v745 = vrot.slane %v744, 4
      %v746 = vadd.f32 %v744, %v745
      %v747 = vrot.slane %v746, 2
      %v748 = vadd.f32 %v746, %v747
      %v749 = vrot.slane %v748, 1
      %v750 = vadd.f32 %v748, %v749
      %v751 = vsel %vm635, %v711, 0.0
      %v752 = vrot.slane %v751, 4
      %v753 = vadd.f32 %v751, %v752
      %v754 = vrot.slane %v753, 2
      %v755 = vadd.f32 %v753, %v754
      %v756 = vrot.slane %v755, 1
      %v757 = vadd.f32 %v755, %v756
      %v758 = vsel %vm635, %v713, 0.0
      %v759 = vrot.slane %v758, 4
      %v760 = vadd.f32 %v758, %v759
      %v761 = vrot.slane %v760, 2
      %v762 = vadd.f32 %v760, %v761
      %v763 = vrot.slane %v762, 1
      %v764 = vadd.f32 %v762, %v763
      %v765 = vsel %vm635, %v715, 0.0
      %v766 = vrot.slane %v765, 4
      %v767 = vadd.f32 %v765, %v766
      %v768 = vrot.slane %v767, 2
      %v769 = vadd.f32 %v767, %v768
      %v770 = vrot.slane %v769, 1
      %v771 = vadd.f32 %v769, %v770
      %v772 = vlog2.pop %v722
      %v773 = vmul.f32 %v772, 0.6931472
      %v774 = vlog2.pop %v729
      %v775 = vmul.f32 %v774, 0.6931472
      %v776 = vlog2.pop %v736
      %v777 = vmul.f32 %v776, 0.6931472
      %v778 = vlog2.pop %v743
      %v779 = vmul.f32 %v778, 0.6931472
      %v780 = vlog2.pop %v750
      %v781 = vmul.f32 %v780, 0.6931472
      %v782 = vlog2.pop %v757
      %v783 = vmul.f32 %v782, 0.6931472
      %v784 = vlog2.pop %v764
      %v785 = vmul.f32 %v784, 0.6931472
      %v786 = vlog2.pop %v771
      %v787 = vmul.f32 %v786, 0.6931472
      %v788 = vadd.f32 %v642, %v773
      %v789 = vadd.f32 %v649, %v775
      %v790 = vadd.f32 %v656, %v777
      %v791 = vadd.f32 %v663, %v779
      %v792 = vadd.f32 %v670, %v781
      %v793 = vadd.f32 %v677, %v783
      %v794 = vadd.f32 %v684, %v785
      %v795 = vadd.f32 %v691, %v787
      %v796 = vsub.f32 %v549, %v788
      %v797 = vsub.f32 %v554, %v789
      %v798 = vsub.f32 %v559, %v790
      %v799 = vsub.f32 %v564, %v791
      %v800 = vsub.f32 %v569, %v792
      %v801 = vsub.f32 %v574, %v793
      %v802 = vsub.f32 %v579, %v794
      %v803 = vsub.f32 %v584, %v795
      %v804 = vsel %vm635, %v796, 0.0
      %v805 = vrot.slane %v804, 4
      %v806 = vadd.f32 %v804, %v805
      %v807 = vrot.slane %v806, 2
      %v808 = vadd.f32 %v806, %v807
      %v809 = vrot.slane %v808, 1
      %v810 = vadd.f32 %v808, %v809
      %v811 = vsel %vm635, %v797, 0.0
      %v812 = vrot.slane %v811, 4
      %v813 = vadd.f32 %v811, %v812
      %v814 = vrot.slane %v813, 2
      %v815 = vadd.f32 %v813, %v814
      %v816 = vrot.slane %v815, 1
      %v817 = vadd.f32 %v815, %v816
      %v818 = vsel %vm635, %v798, 0.0
      %v819 = vrot.slane %v818, 4
      %v820 = vadd.f32 %v818, %v819
      %v821 = vrot.slane %v820, 2
      %v822 = vadd.f32 %v820, %v821
      %v823 = vrot.slane %v822, 1
      %v824 = vadd.f32 %v822, %v823
      %v825 = vsel %vm635, %v799, 0.0
      %v826 = vrot.slane %v825, 4
      %v827 = vadd.f32 %v825, %v826
      %v828 = vrot.slane %v827, 2
      %v829 = vadd.f32 %v827, %v828
      %v830 = vrot.slane %v829, 1
      %v831 = vadd.f32 %v829, %v830
      %v832 = vsel %vm635, %v800, 0.0
      %v833 = vrot.slane %v832, 4
      %v834 = vadd.f32 %v832, %v833
      %v835 = vrot.slane %v834, 2
      %v836 = vadd.f32 %v834, %v835
      %v837 = vrot.slane %v836, 1
      %v838 = vadd.f32 %v836, %v837
      %v839 = vsel %vm635, %v801, 0.0
      %v840 = vrot.slane %v839, 4
      %v841 = vadd.f32 %v839, %v840
      %v842 = vrot.slane %v841, 2
      %v843 = vadd.f32 %v841, %v842
      %v844 = vrot.slane %v843, 1
      %v845 = vadd.f32 %v843, %v844
      %v846 = vsel %vm635, %v802, 0.0
      %v847 = vrot.slane %v846, 4
      %v848 = vadd.f32 %v846, %v847
      %v849 = vrot.slane %v848, 2
      %v850 = vadd.f32 %v848, %v849
      %v851 = vrot.slane %v850, 1
      %v852 = vadd.f32 %v850, %v851
      %v853 = vsel %vm635, %v803, 0.0
      %v854 = vrot.slane %v853, 4
      %v855 = vadd.f32 %v853, %v854
      %v856 = vrot.slane %v855, 2
      %v857 = vadd.f32 %v855, %v856
      %v858 = vrot.slane %v857, 1
      %v859 = vadd.f32 %v857, %v858
      %v860 = vrcp.pop 8.0
      %v861 = vmul.f32 %v810, %v860
      %v862 = vmul.f32 %v817, %v860
      %v863 = vmul.f32 %v824, %v860
      %v864 = vmul.f32 %v831, %v860
      %v865 = vmul.f32 %v838, %v860
      %v866 = vmul.f32 %v845, %v860
      %v867 = vmul.f32 %v852, %v860
      %v868 = vmul.f32 %v859, %v860
      %v869 = vmul.f32 %v861, 100.0
      %v870 = vmul.f32 %v862, 100.0
      %v871 = vmul.f32 %v863, 100.0
      %v872 = vmul.f32 %v864, 100.0
      %v873 = vmul.f32 %v865, 100.0
      %v874 = vmul.f32 %v866, 100.0
      %v875 = vmul.f32 %v867, 100.0
      %v876 = vmul.f32 %v868, 100.0
      %v877 = vsub.f32 %v796, %v869
      %v878 = vsub.f32 %v797, %v870
      %v879 = vsub.f32 %v798, %v871
      %v880 = vsub.f32 %v799, %v872
      %v881 = vsub.f32 %v800, %v873
      %v882 = vsub.f32 %v801, %v874
      %v883 = vsub.f32 %v802, %v875
      %v884 = vsub.f32 %v803, %v876
      %v885 = vxor.u32 %v877, 2147483648
      %v886 = vxor.u32 %v878, 2147483648
      %v887 = vxor.u32 %v879, 2147483648
      %v888 = vxor.u32 %v880, 2147483648
      %v889 = vxor.u32 %v881, 2147483648
      %v890 = vxor.u32 %v882, 2147483648
      %v891 = vxor.u32 %v883, 2147483648
      %v892 = vxor.u32 %v884, 2147483648
      %v893 = vmul.f32 %v885, 1.442695
      %v894 = vpow.pop %v893
      %v895 = vmul.f32 %v886, 1.442695
      %v896 = vpow.pop %v895
      %v897 = vmul.f32 %v887, 1.442695
      %v898 = vpow.pop %v897
      %v899 = vmul.f32 %v888, 1.442695
      %v900 = vpow.pop %v899
      %v901 = vmul.f32 %v889, 1.442695
      %v902 = vpow.pop %v901
      %v903 = vmul.f32 %v890, 1.442695
      %v904 = vpow.pop %v903
      %v905 = vmul.f32 %v891, 1.442695
      %v906 = vpow.pop %v905
      %v907 = vmul.f32 %v892, 1.442695
      %v908 = vpow.pop %v907
      %v909 = vadd.f32 %v894, 1.0
      %v910 = vadd.f32 %v896, 1.0
      %v911 = vadd.f32 %v898, 1.0
      %v912 = vadd.f32 %v900, 1.0
      %v913 = vadd.f32 %v902, 1.0
      %v914 = vadd.f32 %v904, 1.0
      %v915 = vadd.f32 %v906, 1.0
      %v916 = vadd.f32 %v908, 1.0
      %v917 = vrcp.pop %v909
      %v918 = vmul.f32 1.0, %v917
      %v919 = vrcp.pop %v910
      %v920 = vmul.f32 1.0, %v919
      %v921 = vrcp.pop %v911
      %v922 = vmul.f32 1.0, %v921
      %v923 = vrcp.pop %v912
      %v924 = vmul.f32 1.0, %v923
      %v925 = vrcp.pop %v913
      %v926 = vmul.f32 1.0, %v925
      %v927 = vrcp.pop %v914
      %v928 = vmul.f32 1.0, %v927
      %v929 = vrcp.pop %v915
      %v930 = vmul.f32 1.0, %v929
      %v931 = vrcp.pop %v916
      %v932 = vmul.f32 1.0, %v931
      %v933 = vld [vmem:[%s264] sm:$0xff]
      %v934 = vlaneseq
      %v935 = vshrl.u32 %v934, 7
      %v936 = vsub.s32 0, %v935
      %v937 = vrot.slane %v933, %v936
      %939 = vbcast.lane.b32.xlu0 %v937, 256
      %v940 = vpop.permute.xlu0 %939
      %v941 = vlaneseq
      %v942 = vshrl.u32 %v941, 7
      %v943 = vsub.s32 1, %v942
      %v944 = vrot.slane %v933, %v943
      %946 = vbcast.lane.b32.xlu0 %v944, 256
      %v947 = vpop.permute.xlu0 %946
      %v948 = vlaneseq
      %v949 = vshrl.u32 %v948, 7
      %v950 = vsub.s32 2, %v949
      %v951 = vrot.slane %v933, %v950
      %953 = vbcast.lane.b32.xlu0 %v951, 256
      %v954 = vpop.permute.xlu0 %953
      %v955 = vlaneseq
      %v956 = vshrl.u32 %v955, 7
      %v957 = vsub.s32 3, %v956
      %v958 = vrot.slane %v933, %v957
      %960 = vbcast.lane.b32.xlu0 %v958, 256
      %v961 = vpop.permute.xlu0 %960
      %v962 = vlaneseq
      %v963 = vshrl.u32 %v962, 7
      %v964 = vsub.s32 4, %v963
      %v965 = vrot.slane %v933, %v964
      %967 = vbcast.lane.b32.xlu0 %v965, 256
      %v968 = vpop.permute.xlu0 %967
      %v969 = vlaneseq
      %v970 = vshrl.u32 %v969, 7
      %v971 = vsub.s32 5, %v970
      %v972 = vrot.slane %v933, %v971
      %974 = vbcast.lane.b32.xlu0 %v972, 256
      %v975 = vpop.permute.xlu0 %974
      %v976 = vlaneseq
      %v977 = vshrl.u32 %v976, 7
      %v978 = vsub.s32 6, %v977
      %v979 = vrot.slane %v933, %v978
      %981 = vbcast.lane.b32.xlu0 %v979, 256
      %v982 = vpop.permute.xlu0 %981
      %v983 = vlaneseq
      %v984 = vshrl.u32 %v983, 7
      %v985 = vsub.s32 7, %v984
      %v986 = vrot.slane %v933, %v985
      %988 = vbcast.lane.b32.xlu0 %v986, 256
      %v989 = vpop.permute.xlu0 %988
      %v990 = vsub.f32 1.0, %v620
      %v991 = vsub.f32 1.0, %v622
      %v992 = vsub.f32 1.0, %v624
      %v993 = vsub.f32 1.0, %v626
      %v994 = vsub.f32 1.0, %v628
      %v995 = vsub.f32 1.0, %v630
      %v996 = vsub.f32 1.0, %v632
      %v997 = vsub.f32 1.0, %v634
      %v998 = vmax.f32 %v990, %v940
      %v999 = vmax.f32 %v991, %v947
      %v1000 = vmax.f32 %v992, %v954
      %v1001 = vmax.f32 %v993, %v961
      %v1002 = vmax.f32 %v994, %v968
      %v1003 = vmax.f32 %v995, %v975
      %v1004 = vmax.f32 %v996, %v982
      %v1005 = vmax.f32 %v997, %v989
      %v1006 = vsub.f32 1.0, %v940
      %v1007 = vsub.f32 1.0, %v947
      %v1008 = vsub.f32 1.0, %v954
      %v1009 = vsub.f32 1.0, %v961
      %v1010 = vsub.f32 1.0, %v968
      %v1011 = vsub.f32 1.0, %v975
      %v1012 = vsub.f32 1.0, %v982
      %v1013 = vsub.f32 1.0, %v989
      %v1014 = vmax.f32 %v620, %v1006
      %v1015 = vmax.f32 %v622, %v1007
      %v1016 = vmax.f32 %v624, %v1008
      %v1017 = vmax.f32 %v626, %v1009
      %v1018 = vmax.f32 %v628, %v1010
      %v1019 = vmax.f32 %v630, %v1011
      %v1020 = vmax.f32 %v632, %v1012
      %v1021 = vmax.f32 %v634, %v1013
      %v1022 = vmin.f32 %v998, %v1014
      %v1023 = vmin.f32 %v999, %v1015
      %v1024 = vmin.f32 %v1000, %v1016
      %v1025 = vmin.f32 %v1001, %v1017
      %v1026 = vmin.f32 %v1002, %v1018
      %v1027 = vmin.f32 %v1003, %v1019
      %v1028 = vmin.f32 %v1004, %v1020
      %v1029 = vmin.f32 %v1005, %v1021
      %v1030 = vsub.f32 1.0, %v918
      %v1031 = vsub.f32 1.0, %v920
      %v1032 = vsub.f32 1.0, %v922
      %v1033 = vsub.f32 1.0, %v924
      %v1034 = vsub.f32 1.0, %v926
      %v1035 = vsub.f32 1.0, %v928
      %v1036 = vsub.f32 1.0, %v930
      %v1037 = vsub.f32 1.0, %v932
      %1046 = vrot.lane.b32.xlu0 %v1030, 124
      %v1047 = vpop.permute.xlu0 %1046
      %1048 = vrot.lane.b32.xlu0 %v1031, 124
      %v1049 = vpop.permute.xlu0 %1048
      %1050 = vrot.lane.b32.xlu0 %v1032, 124
      %v1051 = vpop.permute.xlu0 %1050
      %1052 = vrot.lane.b32.xlu0 %v1033, 124
      %v1053 = vpop.permute.xlu0 %1052
      %1054 = vrot.lane.b32.xlu0 %v1034, 124
      %v1055 = vpop.permute.xlu0 %1054
      %1056 = vrot.lane.b32.xlu0 %v1035, 124
      %v1057 = vpop.permute.xlu0 %1056
      %1058 = vrot.lane.b32.xlu0 %v1036, 124
      %v1059 = vpop.permute.xlu0 %1058
      %1060 = vrot.lane.b32.xlu0 %v1037, 124
      %v1061 = vpop.permute.xlu0 %1060
      %v1070 = vmax.f32 %v1022, %v1047
      %v1071 = vmax.f32 %v1023, %v1049
      %v1072 = vmax.f32 %v1024, %v1051
      %v1073 = vmax.f32 %v1025, %v1053
      %v1074 = vmax.f32 %v1026, %v1055
      %v1075 = vmax.f32 %v1027, %v1057
      %v1076 = vmax.f32 %v1028, %v1059
      %v1077 = vmax.f32 %v1029, %v1061
      %vm1078 = vcmask 31744
      %v1079 = vsel %vm1078, %v1070, inf
      %v1080 = vrot.slane %v1079, 4
      %v1081 = vmin.f32 %v1079, %v1080
      %v1082 = vrot.slane %v1081, 2
      %v1083 = vmin.f32 %v1081, %v1082
      %v1084 = vrot.slane %v1083, 1
      %v1085 = vmin.f32 %v1083, %v1084
      %v1086 = vsel %vm1078, %v1071, inf
      %v1087 = vrot.slane %v1086, 4
      %v1088 = vmin.f32 %v1086, %v1087
      %v1089 = vrot.slane %v1088, 2
      %v1090 = vmin.f32 %v1088, %v1089
      %v1091 = vrot.slane %v1090, 1
      %v1092 = vmin.f32 %v1090, %v1091
      %v1093 = vsel %vm1078, %v1072, inf
      %v1094 = vrot.slane %v1093, 4
      %v1095 = vmin.f32 %v1093, %v1094
      %v1096 = vrot.slane %v1095, 2
      %v1097 = vmin.f32 %v1095, %v1096
      %v1098 = vrot.slane %v1097, 1
      %v1099 = vmin.f32 %v1097, %v1098
      %v1100 = vsel %vm1078, %v1073, inf
      %v1101 = vrot.slane %v1100, 4
      %v1102 = vmin.f32 %v1100, %v1101
      %v1103 = vrot.slane %v1102, 2
      %v1104 = vmin.f32 %v1102, %v1103
      %v1105 = vrot.slane %v1104, 1
      %v1106 = vmin.f32 %v1104, %v1105
      %v1107 = vsel %vm1078, %v1074, inf
      %v1108 = vrot.slane %v1107, 4
      %v1109 = vmin.f32 %v1107, %v1108
      %v1110 = vrot.slane %v1109, 2
      %v1111 = vmin.f32 %v1109, %v1110
      %v1112 = vrot.slane %v1111, 1
      %v1113 = vmin.f32 %v1111, %v1112
      %v1114 = vsel %vm1078, %v1075, inf
      %v1115 = vrot.slane %v1114, 4
      %v1116 = vmin.f32 %v1114, %v1115
      %v1117 = vrot.slane %v1116, 2
      %v1118 = vmin.f32 %v1116, %v1117
      %v1119 = vrot.slane %v1118, 1
      %v1120 = vmin.f32 %v1118, %v1119
      %v1121 = vsel %vm1078, %v1076, inf
      %v1122 = vrot.slane %v1121, 4
      %v1123 = vmin.f32 %v1121, %v1122
      %v1124 = vrot.slane %v1123, 2
      %v1125 = vmin.f32 %v1123, %v1124
      %v1126 = vrot.slane %v1125, 1
      %v1127 = vmin.f32 %v1125, %v1126
      %v1128 = vsel %vm1078, %v1077, inf
      %v1129 = vrot.slane %v1128, 4
      %v1130 = vmin.f32 %v1128, %v1129
      %v1131 = vrot.slane %v1130, 2
      %v1132 = vmin.f32 %v1130, %v1131
      %v1133 = vrot.slane %v1132, 1
      %v1134 = vmin.f32 %v1132, %v1133
      %vm1143 = vcmask 1041409
      %v1144 = vsel %vm1143, %v1092, %v1085
      %vm1145 = vcmask 1042434
      %v1146 = vsel %vm1145, %v1099, %v1144
      %vm1147 = vcmask 1043459
      %v1148 = vsel %vm1147, %v1106, %v1146
      %vm1149 = vcmask 1044484
      %v1150 = vsel %vm1149, %v1113, %v1148
      %vm1151 = vcmask 1045509
      %v1152 = vsel %vm1151, %v1120, %v1150
      %vm1153 = vcmask 1046534
      %v1154 = vsel %vm1153, %v1127, %v1152
      %vm1155 = vcmask 1047559
      %v1156 = vsel %vm1155, %v1134, %v1154
      %1158 = vst.msk [vmem:[%s268] sm:$0xff] %vm1078, %v1156
      %p1159 = scmp.lt.s32.totalorder %s17, 1
      %s1160 = scalar_select %p1159, %s17, 1
      %s1161 = smul.addr %s1160, 8
      %s1162 = scalar_lea.vmem %s6, %s1161
      // Predicated region
      $region45: #{tpu_custom_call.1} parent=43 // pred_check
        %p1163 = pneg %p171
      $region46: #{tpu_custom_call.1} parent=43 // pred_check_branch
        %1165 = sbr.rel (%p1163) target = $region48
      $region47: #{tpu_custom_call.1} parent=43 // pred_region
        _
      $region48: #{tpu_custom_call.1} parent=43 // pred_fallthru
        _
    $region44: #{tpu_custom_call.1} parent=5 // pred_fallthru
      _
    %p1166 = scmp.le.s32.totalorder 2, %s12
    // Predicated region
    $region49: #{tpu_custom_call.1} parent=5 // pred_check
      %p1167 = pneg %p1166
    $region50: #{tpu_custom_call.1} parent=5 // pred_check_branch
      %1169 = sbr.rel (%p1167) target = $region52
    $region51: #{tpu_custom_call.1} parent=5 // pred_region
      %s1170 = ssub.s32 %s12, 2
      // Predicated region
      $region53: #{tpu_custom_call.1} parent=51 // pred_check
        %p1171 = pneg %p177
      $region54: #{tpu_custom_call.1} parent=51 // pred_check_branch
        %1173 = sbr.rel (%p1171) target = $region56
      $region55: #{tpu_custom_call.1} parent=51 // pred_region
        %p1174 = scmp.lt.s32.totalorder %s18, 1
        %s1175 = scalar_select %p1174, %s18, 1
        %s1176 = smul.addr %s1175, 8
        %s1177 = scalar_lea.vmem %s6, %s1176
      $region56: #{tpu_custom_call.1} parent=51 // pred_fallthru
        _
    $region52: #{tpu_custom_call.1} parent=5 // pred_fallthru
      _
  $region6: #{tpu_custom_call.1} parent=0 // loop_footer
    %s16 = sadd.s32 1, %s12
  $region7: #{tpu_custom_call.1} parent=0 // loop_footer_branch
    %11 = sbr.rel target = $region3
  $region8: #{tpu_custom_call.1} parent=0 // loop_exit
    _

</llo_original>
